<compile_context>
chip_gen: v7x
topology: tpu7x:2x2x1
jax: 0.10.0
libtpu: 0.0.40
codegen_flags: <defaults>
</compile_context>

<pallas_src>
import functools

import jax
import jax.numpy as jnp
from jax.experimental import pallas as pl
from jax.experimental.pallas import tpu as pltpu

_EPS = 1e-8  # F.cosine_similarity default eps
# TODO(synk): PyTorch clamps each norm separately (dot / (max(|p1|,eps)*max(|p2|,eps)));
# we clamp the product (dot / max(|p1|*|p2|, eps)).  Differs only for norms < 1e-8.


# ------------------------------ Pallas kernel ------------------------------

def _bnet_kernel(x_ref, w1_ref, b1_ref, wct_ref, bc_ref, out_ref, *,
                 shot_num, channel, d):
    sn2 = shot_num // 2
    f32 = jnp.float32

    def xslice(k):
        # Lane-aligned static slice of the flat (TN, shot_num*D) block.
        return x_ref[:, k * d:(k + 1) * d].astype(f32)

    # ---- context path: Conv2d(1, C, (shot_num, 1)) + bias, then max over C --
    # Slices are taken per-path (not pinned across both paths) to keep
    # trace-level live ranges short; slices are plain offset reads of the
    # input VMEM block, so re-slicing is free.
    x_rows = [xslice(k) for k in range(shot_num)]
    ctx = None
    for c in range(channel):
        acc = w1_ref[c, 0] * x_rows[0]
        for k in range(1, shot_num):
            acc = acc + w1_ref[c, k] * x_rows[k]
        acc = acc + b1_ref[c]
        ctx = acc if ctx is None else jnp.maximum(ctx, acc)
    out_ref[:, :d] = ctx
    del x_rows, ctx, acc

    # ---- cosine path, Gram reformulation -----------------------------------
    # p1[c] = sum_k wc[c,k]*x1[k] + bc[c];  p2[c] = sum_k wc[c,k]*x2[k] + bc[c]
    # <p1[c],p2[c]> = sum_{k,j} wc[c,k]wc[c,j] G12[k,j]
    #               + bc[c]*sum_k wc[c,k]*(S1[k]+S2[k]) + bc[c]^2 * D
    # (and analogously for the two squared norms with G11 / G22).
    x1 = [xslice(k) for k in range(sn2)]
    x2 = [xslice(sn2 + k) for k in range(sn2)]

    def rsum(a):
        return jnp.sum(a, axis=-1, keepdims=True)          # (TN, 1) XLU reduce

    g12 = [[rsum(x1[k] * x2[j]) for j in range(sn2)] for k in range(sn2)]
    g11 = {(k, j): rsum(x1[k] * x1[j])
           for k in range(sn2) for j in range(k, sn2)}
    g22 = {(k, j): rsum(x2[k] * x2[j])
           for k in range(sn2) for j in range(k, sn2)}
    s1 = [rsum(x1[k]) for k in range(sn2)]
    s2 = [rsum(x2[k]) for k in range(sn2)]

    wct = wct_ref[...].astype(f32)                          # (sn2, C)
    bcv = bc_ref[...].astype(f32)                           # (1, C)
    wcv = [wct[k:k + 1, :] for k in range(sn2)]             # (1, C) each

    w12 = None
    w11 = None
    w22 = None

    def add(a, t):
        return t if a is None else a + t

    for k in range(sn2):
        for j in range(sn2):
            w12 = add(w12, (wcv[k] * wcv[j]) * g12[k][j])   # (1,C)*(TN,1)->(TN,C)
        for j in range(k, sn2):
            cc = (wcv[k] * wcv[j]) * (1.0 if k == j else 2.0)
            w11 = add(w11, cc * g11[(k, j)])
            w22 = add(w22, cc * g22[(k, j)])
        bw = bcv * wcv[k]
        w12 = w12 + bw * (s1[k] + s2[k])
        w11 = w11 + (2.0 * bw) * s1[k]
        w22 = w22 + (2.0 * bw) * s2[k]

    const = bcv * bcv * float(d)                            # (1, C)
    w12 = w12 + const
    w11 = w11 + const
    w22 = w22 + const

    sim = w12 * jax.lax.rsqrt(jnp.maximum(w11 * w22, _EPS * _EPS))
    out_ref[:, d:] = sim


# -------------------------------- wrapper -----------------------------------

def bnet_forward(x, params, channel):
    """x: (B, S, shot_num, D) -> bound: (B*S, D + channel), float32."""
    B, S, SN, D = x.shape
    N = B * S
    sn2 = SN // 2

    xr = x.reshape(N, SN * D)                       # metadata-only reshape
    if xr.dtype not in (jnp.float32, jnp.bfloat16):
        xr = xr.astype(jnp.float32)

    w1 = params["w1"].reshape(channel, SN).astype(jnp.float32)        # BNet.conv1
    b1 = params["b1"].reshape(channel).astype(jnp.float32)
    wct = params["wc"].reshape(channel, sn2).T.astype(jnp.float32)    # (sn2, C)
    bc = params["bc"].reshape(1, channel).astype(jnp.float32)

    # Row tile: multiple of 8 sublanes, capped at 512, and sized so the
    # "parallel" row grid has >= 2 steps whenever N allows (v7x megacore).
    TN = min(512, ((pl.cdiv(N, 2) + 7) // 8) * 8)
    n_pad = pl.cdiv(N, TN) * TN
    if n_pad != N:
        xr = jnp.pad(xr, ((0, n_pad - N), (0, 0)))

    kernel = functools.partial(_bnet_kernel, shot_num=SN, channel=channel, d=D)
    smem = pl.BlockSpec(memory_space=pltpu.MemorySpace.SMEM)
    out = pl.pallas_call(
        kernel,
        out_shape=jax.ShapeDtypeStruct((n_pad, D + channel), jnp.float32),
        grid=(n_pad // TN,),
        in_specs=[
            pl.BlockSpec((TN, SN * D), lambda i: (i, 0)),     # x, lane-dense
            smem,                                             # w1 (C, SN) scalars
            smem,                                             # b1 (C,)   scalars
            pl.BlockSpec((sn2, channel), lambda i: (0, 0)),   # wc^T lane vectors
            pl.BlockSpec((1, channel), lambda i: (0, 0)),     # bc   lane vector
        ],
        out_specs=pl.BlockSpec((TN, D + channel), lambda i: (i, 0)),
        compiler_params=pltpu.CompilerParams(
            dimension_semantics=("parallel",)),
    )(xr, w1, b1, wct, bc)

    # TODO(synk): PyTorch `.squeeze()` would also drop the batch dim when B*S == 1;
    # we always keep the explicit (B*S, D + channel) shape.
    return out[:N] if n_pad != N else out


# ------------------------- pure-JAX reference (check) ------------------------

def bnet_reference(x, params, channel):
    B, S, SN, D = x.shape
    N = B * S
    xr = x.reshape(N, SN, D).astype(jnp.float32)
    w1 = params["w1"].reshape(channel, SN)
    b1 = params["b1"]
    conv = jnp.einsum("ck,nkd->ncd", w1, xr) + b1[None, :, None]
    ctx = conv.max(axis=1)                                   # (N, D)
    sn2 = SN // 2
    wc = params["wc"].reshape(channel, sn2)
    bc = params["bc"]
    p1 = jnp.einsum("ck,nkd->ncd", wc, xr[:, :sn2, :]) + bc[None, :, None]
    p2 = jnp.einsum("ck,nkd->ncd", wc, xr[:, sn2:, :]) + bc[None, :, None]
    w12 = jnp.sum(p1 * p2, axis=-1)
    w11 = jnp.sum(p1 * p1, axis=-1)
    w22 = jnp.sum(p2 * p2, axis=-1)
    sim = w12 / jnp.sqrt(jnp.maximum(w11 * w22, _EPS * _EPS))
    return jnp.concatenate([ctx, sim], axis=1)


# ----------------------------------- main ------------------------------------

if __name__ == "__main__":
    key = jax.random.PRNGKey(0)
    B, S, shot_num, D = 2, 4, 4, 256        # x: (B, S, shot_num, D)
    channel = 16                            # cfg.model.sim_channel
    sn2 = shot_num // 2

    k1, k2, k3, k4, kx = jax.random.split(key, 5)
    params = {
        "w1": jax.random.normal(k1, (channel, 1, shot_num, 1), jnp.float32)
              * (1.0 / shot_num) ** 0.5,
        "b1": 0.1 * jax.random.normal(k2, (channel,), jnp.float32),
        "wc": jax.random.normal(k3, (channel, 1, sn2, 1), jnp.float32)
              * (1.0 / sn2) ** 0.5,
        "bc": 0.1 * jax.random.normal(k4, (channel,), jnp.float32),
    }
    x = jax.random.normal(kx, (B, S, shot_num, D), jnp.float32)

    bound = bnet_forward(x, params, channel)
    bound = jax.block_until_ready(bound)

    assert bound.shape == (B * S, D + channel), bound.shape
    assert bool(jnp.all(jnp.isfinite(bound)))
    ref = bnet_reference(x, params, channel)
    assert bool(jnp.allclose(bound, ref, rtol=1e-4, atol=5e-5)), \
        float(jnp.max(jnp.abs(bound - ref)))
    print("KERNEL_OK")
</pallas_src>

<mosaic_0001>
module attributes {stable_mosaic.version = 11 : i64} {
  func.func @_bnet_kernel(%arg0: i32, %arg1: memref<8x1024xf32, #tpu.memory_space<vmem>>, %arg2: memref<16x4xf32, #tpu.memory_space<smem>>, %arg3: memref<16xf32, #tpu.memory_space<smem>>, %arg4: memref<2x16xf32, #tpu.memory_space<vmem>>, %arg5: memref<1x16xf32, #tpu.memory_space<vmem>>, %arg6: memref<8x272xf32, #tpu.memory_space<vmem>>) attributes {dimension_semantics = [#tpu.dimension_semantics<parallel>], iteration_bounds = array<i64: 1>, scalar_prefetch = 0 : i64, scratch_operands = 0 : i64, tpu.core_type = #tpu.core_type<tc>, window_params = [{transform_indices = @transform_0, window_bounds = array<i64: 8, 1024>}, {transform_indices = @transform_1, window_bounds = array<i64: 16, 4>}, {transform_indices = @transform_2, window_bounds = array<i64: 16>}, {pipeline_mode = #tpu.pipeline_mode<synchronous>, transform_indices = @transform_3, window_bounds = array<i64: 2, 16>}, {pipeline_mode = #tpu.pipeline_mode<synchronous>, transform_indices = @transform_4, window_bounds = array<i64: 1, 16>}, {transform_indices = @transform_5, window_bounds = array<i64: 8, 272>}]} {
    %c0 = arith.constant 0 : index
    %c0_0 = arith.constant 0 : index
    %0 = vector.load %arg1[%c0, %c0_0] : memref<8x1024xf32, #tpu.memory_space<vmem>>, vector<8x256xf32>
    %c0_1 = arith.constant 0 : index
    %c256 = arith.constant 256 : index
    %1 = vector.load %arg1[%c0_1, %c256] : memref<8x1024xf32, #tpu.memory_space<vmem>>, vector<8x256xf32>
    %c0_2 = arith.constant 0 : index
    %c512 = arith.constant 512 : index
    %2 = vector.load %arg1[%c0_2, %c512] : memref<8x1024xf32, #tpu.memory_space<vmem>>, vector<8x256xf32>
    %c0_3 = arith.constant 0 : index
    %c768 = arith.constant 768 : index
    %3 = vector.load %arg1[%c0_3, %c768] : memref<8x1024xf32, #tpu.memory_space<vmem>>, vector<8x256xf32>
    %c0_4 = arith.constant 0 : index
    %c0_5 = arith.constant 0 : index
    %4 = memref.load %arg2[%c0_4, %c0_5] : memref<16x4xf32, #tpu.memory_space<smem>>
    %5 = vector.broadcast %4 : f32 to vector<8x256xf32>
    %6 = arith.mulf %5, %0 : vector<8x256xf32>
    %c0_6 = arith.constant 0 : index
    %c1 = arith.constant 1 : index
    %7 = memref.load %arg2[%c0_6, %c1] : memref<16x4xf32, #tpu.memory_space<smem>>
    %8 = vector.broadcast %7 : f32 to vector<8x256xf32>
    %9 = arith.mulf %8, %1 : vector<8x256xf32>
    %10 = arith.addf %6, %9 : vector<8x256xf32>
    %c0_7 = arith.constant 0 : index
    %c2 = arith.constant 2 : index
    %11 = memref.load %arg2[%c0_7, %c2] : memref<16x4xf32, #tpu.memory_space<smem>>
    %12 = vector.broadcast %11 : f32 to vector<8x256xf32>
    %13 = arith.mulf %12, %2 : vector<8x256xf32>
    %14 = arith.addf %10, %13 : vector<8x256xf32>
    %c0_8 = arith.constant 0 : index
    %c3 = arith.constant 3 : index
    %15 = memref.load %arg2[%c0_8, %c3] : memref<16x4xf32, #tpu.memory_space<smem>>
    %16 = vector.broadcast %15 : f32 to vector<8x256xf32>
    %17 = arith.mulf %16, %3 : vector<8x256xf32>
    %18 = arith.addf %14, %17 : vector<8x256xf32>
    %c0_9 = arith.constant 0 : index
    %19 = memref.load %arg3[%c0_9] : memref<16xf32, #tpu.memory_space<smem>>
    %20 = vector.broadcast %19 : f32 to vector<8x256xf32>
    %21 = arith.addf %18, %20 : vector<8x256xf32>
    %c1_10 = arith.constant 1 : index
    %c0_11 = arith.constant 0 : index
    %22 = memref.load %arg2[%c1_10, %c0_11] : memref<16x4xf32, #tpu.memory_space<smem>>
    %23 = vector.broadcast %22 : f32 to vector<8x256xf32>
    %24 = arith.mulf %23, %0 : vector<8x256xf32>
    %c1_12 = arith.constant 1 : index
    %c1_13 = arith.constant 1 : index
    %25 = memref.load %arg2[%c1_12, %c1_13] : memref<16x4xf32, #tpu.memory_space<smem>>
    %26 = vector.broadcast %25 : f32 to vector<8x256xf32>
    %27 = arith.mulf %26, %1 : vector<8x256xf32>
    %28 = arith.addf %24, %27 : vector<8x256xf32>
    %c1_14 = arith.constant 1 : index
    %c2_15 = arith.constant 2 : index
    %29 = memref.load %arg2[%c1_14, %c2_15] : memref<16x4xf32, #tpu.memory_space<smem>>
    %30 = vector.broadcast %29 : f32 to vector<8x256xf32>
    %31 = arith.mulf %30, %2 : vector<8x256xf32>
    %32 = arith.addf %28, %31 : vector<8x256xf32>
    %c1_16 = arith.constant 1 : index
    %c3_17 = arith.constant 3 : index
    %33 = memref.load %arg2[%c1_16, %c3_17] : memref<16x4xf32, #tpu.memory_space<smem>>
    %34 = vector.broadcast %33 : f32 to vector<8x256xf32>
    %35 = arith.mulf %34, %3 : vector<8x256xf32>
    %36 = arith.addf %32, %35 : vector<8x256xf32>
    %c1_18 = arith.constant 1 : index
    %37 = memref.load %arg3[%c1_18] : memref<16xf32, #tpu.memory_space<smem>>
    %38 = vector.broadcast %37 : f32 to vector<8x256xf32>
    %39 = arith.addf %36, %38 : vector<8x256xf32>
    %40 = arith.maximumf %21, %39 : vector<8x256xf32>
    %c2_19 = arith.constant 2 : index
    %c0_20 = arith.constant 0 : index
    %41 = memref.load %arg2[%c2_19, %c0_20] : memref<16x4xf32, #tpu.memory_space<smem>>
    %42 = vector.broadcast %41 : f32 to vector<8x256xf32>
    %43 = arith.mulf %42, %0 : vector<8x256xf32>
    %c2_21 = arith.constant 2 : index
    %c1_22 = arith.constant 1 : index
    %44 = memref.load %arg2[%c2_21, %c1_22] : memref<16x4xf32, #tpu.memory_space<smem>>
    %45 = vector.broadcast %44 : f32 to vector<8x256xf32>
    %46 = arith.mulf %45, %1 : vector<8x256xf32>
    %47 = arith.addf %43, %46 : vector<8x256xf32>
    %c2_23 = arith.constant 2 : index
    %c2_24 = arith.constant 2 : index
    %48 = memref.load %arg2[%c2_23, %c2_24] : memref<16x4xf32, #tpu.memory_space<smem>>
    %49 = vector.broadcast %48 : f32 to vector<8x256xf32>
    %50 = arith.mulf %49, %2 : vector<8x256xf32>
    %51 = arith.addf %47, %50 : vector<8x256xf32>
    %c2_25 = arith.constant 2 : index
    %c3_26 = arith.constant 3 : index
    %52 = memref.load %arg2[%c2_25, %c3_26] : memref<16x4xf32, #tpu.memory_space<smem>>
    %53 = vector.broadcast %52 : f32 to vector<8x256xf32>
    %54 = arith.mulf %53, %3 : vector<8x256xf32>
    %55 = arith.addf %51, %54 : vector<8x256xf32>
    %c2_27 = arith.constant 2 : index
    %56 = memref.load %arg3[%c2_27] : memref<16xf32, #tpu.memory_space<smem>>
    %57 = vector.broadcast %56 : f32 to vector<8x256xf32>
    %58 = arith.addf %55, %57 : vector<8x256xf32>
    %59 = arith.maximumf %40, %58 : vector<8x256xf32>
    %c3_28 = arith.constant 3 : index
    %c0_29 = arith.constant 0 : index
    %60 = memref.load %arg2[%c3_28, %c0_29] : memref<16x4xf32, #tpu.memory_space<smem>>
    %61 = vector.broadcast %60 : f32 to vector<8x256xf32>
    %62 = arith.mulf %61, %0 : vector<8x256xf32>
    %c3_30 = arith.constant 3 : index
    %c1_31 = arith.constant 1 : index
    %63 = memref.load %arg2[%c3_30, %c1_31] : memref<16x4xf32, #tpu.memory_space<smem>>
    %64 = vector.broadcast %63 : f32 to vector<8x256xf32>
    %65 = arith.mulf %64, %1 : vector<8x256xf32>
    %66 = arith.addf %62, %65 : vector<8x256xf32>
    %c3_32 = arith.constant 3 : index
    %c2_33 = arith.constant 2 : index
    %67 = memref.load %arg2[%c3_32, %c2_33] : memref<16x4xf32, #tpu.memory_space<smem>>
    %68 = vector.broadcast %67 : f32 to vector<8x256xf32>
    %69 = arith.mulf %68, %2 : vector<8x256xf32>
    %70 = arith.addf %66, %69 : vector<8x256xf32>
    %c3_34 = arith.constant 3 : index
    %c3_35 = arith.constant 3 : index
    %71 = memref.load %arg2[%c3_34, %c3_35] : memref<16x4xf32, #tpu.memory_space<smem>>
    %72 = vector.broadcast %71 : f32 to vector<8x256xf32>
    %73 = arith.mulf %72, %3 : vector<8x256xf32>
    %74 = arith.addf %70, %73 : vector<8x256xf32>
    %c3_36 = arith.constant 3 : index
    %75 = memref.load %arg3[%c3_36] : memref<16xf32, #tpu.memory_space<smem>>
    %76 = vector.broadcast %75 : f32 to vector<8x256xf32>
    %77 = arith.addf %74, %76 : vector<8x256xf32>
    %78 = arith.maximumf %59, %77 : vector<8x256xf32>
    %c4 = arith.constant 4 : index
    %c0_37 = arith.constant 0 : index
    %79 = memref.load %arg2[%c4, %c0_37] : memref<16x4xf32, #tpu.memory_space<smem>>
    %80 = vector.broadcast %79 : f32 to vector<8x256xf32>
    %81 = arith.mulf %80, %0 : vector<8x256xf32>
    %c4_38 = arith.constant 4 : index
    %c1_39 = arith.constant 1 : index
    %82 = memref.load %arg2[%c4_38, %c1_39] : memref<16x4xf32, #tpu.memory_space<smem>>
    %83 = vector.broadcast %82 : f32 to vector<8x256xf32>
    %84 = arith.mulf %83, %1 : vector<8x256xf32>
    %85 = arith.addf %81, %84 : vector<8x256xf32>
    %c4_40 = arith.constant 4 : index
    %c2_41 = arith.constant 2 : index
    %86 = memref.load %arg2[%c4_40, %c2_41] : memref<16x4xf32, #tpu.memory_space<smem>>
    %87 = vector.broadcast %86 : f32 to vector<8x256xf32>
    %88 = arith.mulf %87, %2 : vector<8x256xf32>
    %89 = arith.addf %85, %88 : vector<8x256xf32>
    %c4_42 = arith.constant 4 : index
    %c3_43 = arith.constant 3 : index
    %90 = memref.load %arg2[%c4_42, %c3_43] : memref<16x4xf32, #tpu.memory_space<smem>>
    %91 = vector.broadcast %90 : f32 to vector<8x256xf32>
    %92 = arith.mulf %91, %3 : vector<8x256xf32>
    %93 = arith.addf %89, %92 : vector<8x256xf32>
    %c4_44 = arith.constant 4 : index
    %94 = memref.load %arg3[%c4_44] : memref<16xf32, #tpu.memory_space<smem>>
    %95 = vector.broadcast %94 : f32 to vector<8x256xf32>
    %96 = arith.addf %93, %95 : vector<8x256xf32>
    %97 = arith.maximumf %78, %96 : vector<8x256xf32>
    %c5 = arith.constant 5 : index
    %c0_45 = arith.constant 0 : index
    %98 = memref.load %arg2[%c5, %c0_45] : memref<16x4xf32, #tpu.memory_space<smem>>
    %99 = vector.broadcast %98 : f32 to vector<8x256xf32>
    %100 = arith.mulf %99, %0 : vector<8x256xf32>
    %c5_46 = arith.constant 5 : index
    %c1_47 = arith.constant 1 : index
    %101 = memref.load %arg2[%c5_46, %c1_47] : memref<16x4xf32, #tpu.memory_space<smem>>
    %102 = vector.broadcast %101 : f32 to vector<8x256xf32>
    %103 = arith.mulf %102, %1 : vector<8x256xf32>
    %104 = arith.addf %100, %103 : vector<8x256xf32>
    %c5_48 = arith.constant 5 : index
    %c2_49 = arith.constant 2 : index
    %105 = memref.load %arg2[%c5_48, %c2_49] : memref<16x4xf32, #tpu.memory_space<smem>>
    %106 = vector.broadcast %105 : f32 to vector<8x256xf32>
    %107 = arith.mulf %106, %2 : vector<8x256xf32>
    %108 = arith.addf %104, %107 : vector<8x256xf32>
    %c5_50 = arith.constant 5 : index
    %c3_51 = arith.constant 3 : index
    %109 = memref.load %arg2[%c5_50, %c3_51] : memref<16x4xf32, #tpu.memory_space<smem>>
    %110 = vector.broadcast %109 : f32 to vector<8x256xf32>
    %111 = arith.mulf %110, %3 : vector<8x256xf32>
    %112 = arith.addf %108, %111 : vector<8x256xf32>
    %c5_52 = arith.constant 5 : index
    %113 = memref.load %arg3[%c5_52] : memref<16xf32, #tpu.memory_space<smem>>
    %114 = vector.broadcast %113 : f32 to vector<8x256xf32>
    %115 = arith.addf %112, %114 : vector<8x256xf32>
    %116 = arith.maximumf %97, %115 : vector<8x256xf32>
    %c6 = arith.constant 6 : index
    %c0_53 = arith.constant 0 : index
    %117 = memref.load %arg2[%c6, %c0_53] : memref<16x4xf32, #tpu.memory_space<smem>>
    %118 = vector.broadcast %117 : f32 to vector<8x256xf32>
    %119 = arith.mulf %118, %0 : vector<8x256xf32>
    %c6_54 = arith.constant 6 : index
    %c1_55 = arith.constant 1 : index
    %120 = memref.load %arg2[%c6_54, %c1_55] : memref<16x4xf32, #tpu.memory_space<smem>>
    %121 = vector.broadcast %120 : f32 to vector<8x256xf32>
    %122 = arith.mulf %121, %1 : vector<8x256xf32>
    %123 = arith.addf %119, %122 : vector<8x256xf32>
    %c6_56 = arith.constant 6 : index
    %c2_57 = arith.constant 2 : index
    %124 = memref.load %arg2[%c6_56, %c2_57] : memref<16x4xf32, #tpu.memory_space<smem>>
    %125 = vector.broadcast %124 : f32 to vector<8x256xf32>
    %126 = arith.mulf %125, %2 : vector<8x256xf32>
    %127 = arith.addf %123, %126 : vector<8x256xf32>
    %c6_58 = arith.constant 6 : index
    %c3_59 = arith.constant 3 : index
    %128 = memref.load %arg2[%c6_58, %c3_59] : memref<16x4xf32, #tpu.memory_space<smem>>
    %129 = vector.broadcast %128 : f32 to vector<8x256xf32>
    %130 = arith.mulf %129, %3 : vector<8x256xf32>
    %131 = arith.addf %127, %130 : vector<8x256xf32>
    %c6_60 = arith.constant 6 : index
    %132 = memref.load %arg3[%c6_60] : memref<16xf32, #tpu.memory_space<smem>>
    %133 = vector.broadcast %132 : f32 to vector<8x256xf32>
    %134 = arith.addf %131, %133 : vector<8x256xf32>
    %135 = arith.maximumf %116, %134 : vector<8x256xf32>
    %c7 = arith.constant 7 : index
    %c0_61 = arith.constant 0 : index
    %136 = memref.load %arg2[%c7, %c0_61] : memref<16x4xf32, #tpu.memory_space<smem>>
    %137 = vector.broadcast %136 : f32 to vector<8x256xf32>
    %138 = arith.mulf %137, %0 : vector<8x256xf32>
    %c7_62 = arith.constant 7 : index
    %c1_63 = arith.constant 1 : index
    %139 = memref.load %arg2[%c7_62, %c1_63] : memref<16x4xf32, #tpu.memory_space<smem>>
    %140 = vector.broadcast %139 : f32 to vector<8x256xf32>
    %141 = arith.mulf %140, %1 : vector<8x256xf32>
    %142 = arith.addf %138, %141 : vector<8x256xf32>
    %c7_64 = arith.constant 7 : index
    %c2_65 = arith.constant 2 : index
    %143 = memref.load %arg2[%c7_64, %c2_65] : memref<16x4xf32, #tpu.memory_space<smem>>
    %144 = vector.broadcast %143 : f32 to vector<8x256xf32>
    %145 = arith.mulf %144, %2 : vector<8x256xf32>
    %146 = arith.addf %142, %145 : vector<8x256xf32>
    %c7_66 = arith.constant 7 : index
    %c3_67 = arith.constant 3 : index
    %147 = memref.load %arg2[%c7_66, %c3_67] : memref<16x4xf32, #tpu.memory_space<smem>>
    %148 = vector.broadcast %147 : f32 to vector<8x256xf32>
    %149 = arith.mulf %148, %3 : vector<8x256xf32>
    %150 = arith.addf %146, %149 : vector<8x256xf32>
    %c7_68 = arith.constant 7 : index
    %151 = memref.load %arg3[%c7_68] : memref<16xf32, #tpu.memory_space<smem>>
    %152 = vector.broadcast %151 : f32 to vector<8x256xf32>
    %153 = arith.addf %150, %152 : vector<8x256xf32>
    %154 = arith.maximumf %135, %153 : vector<8x256xf32>
    %c8 = arith.constant 8 : index
    %c0_69 = arith.constant 0 : index
    %155 = memref.load %arg2[%c8, %c0_69] : memref<16x4xf32, #tpu.memory_space<smem>>
    %156 = vector.broadcast %155 : f32 to vector<8x256xf32>
    %157 = arith.mulf %156, %0 : vector<8x256xf32>
    %c8_70 = arith.constant 8 : index
    %c1_71 = arith.constant 1 : index
    %158 = memref.load %arg2[%c8_70, %c1_71] : memref<16x4xf32, #tpu.memory_space<smem>>
    %159 = vector.broadcast %158 : f32 to vector<8x256xf32>
    %160 = arith.mulf %159, %1 : vector<8x256xf32>
    %161 = arith.addf %157, %160 : vector<8x256xf32>
    %c8_72 = arith.constant 8 : index
    %c2_73 = arith.constant 2 : index
    %162 = memref.load %arg2[%c8_72, %c2_73] : memref<16x4xf32, #tpu.memory_space<smem>>
    %163 = vector.broadcast %162 : f32 to vector<8x256xf32>
    %164 = arith.mulf %163, %2 : vector<8x256xf32>
    %165 = arith.addf %161, %164 : vector<8x256xf32>
    %c8_74 = arith.constant 8 : index
    %c3_75 = arith.constant 3 : index
    %166 = memref.load %arg2[%c8_74, %c3_75] : memref<16x4xf32, #tpu.memory_space<smem>>
    %167 = vector.broadcast %166 : f32 to vector<8x256xf32>
    %168 = arith.mulf %167, %3 : vector<8x256xf32>
    %169 = arith.addf %165, %168 : vector<8x256xf32>
    %c8_76 = arith.constant 8 : index
    %170 = memref.load %arg3[%c8_76] : memref<16xf32, #tpu.memory_space<smem>>
    %171 = vector.broadcast %170 : f32 to vector<8x256xf32>
    %172 = arith.addf %169, %171 : vector<8x256xf32>
    %173 = arith.maximumf %154, %172 : vector<8x256xf32>
    %c9 = arith.constant 9 : index
    %c0_77 = arith.constant 0 : index
    %174 = memref.load %arg2[%c9, %c0_77] : memref<16x4xf32, #tpu.memory_space<smem>>
    %175 = vector.broadcast %174 : f32 to vector<8x256xf32>
    %176 = arith.mulf %175, %0 : vector<8x256xf32>
    %c9_78 = arith.constant 9 : index
    %c1_79 = arith.constant 1 : index
    %177 = memref.load %arg2[%c9_78, %c1_79] : memref<16x4xf32, #tpu.memory_space<smem>>
    %178 = vector.broadcast %177 : f32 to vector<8x256xf32>
    %179 = arith.mulf %178, %1 : vector<8x256xf32>
    %180 = arith.addf %176, %179 : vector<8x256xf32>
    %c9_80 = arith.constant 9 : index
    %c2_81 = arith.constant 2 : index
    %181 = memref.load %arg2[%c9_80, %c2_81] : memref<16x4xf32, #tpu.memory_space<smem>>
    %182 = vector.broadcast %181 : f32 to vector<8x256xf32>
    %183 = arith.mulf %182, %2 : vector<8x256xf32>
    %184 = arith.addf %180, %183 : vector<8x256xf32>
    %c9_82 = arith.constant 9 : index
    %c3_83 = arith.constant 3 : index
    %185 = memref.load %arg2[%c9_82, %c3_83] : memref<16x4xf32, #tpu.memory_space<smem>>
    %186 = vector.broadcast %185 : f32 to vector<8x256xf32>
    %187 = arith.mulf %186, %3 : vector<8x256xf32>
    %188 = arith.addf %184, %187 : vector<8x256xf32>
    %c9_84 = arith.constant 9 : index
    %189 = memref.load %arg3[%c9_84] : memref<16xf32, #tpu.memory_space<smem>>
    %190 = vector.broadcast %189 : f32 to vector<8x256xf32>
    %191 = arith.addf %188, %190 : vector<8x256xf32>
    %192 = arith.maximumf %173, %191 : vector<8x256xf32>
    %c10 = arith.constant 10 : index
    %c0_85 = arith.constant 0 : index
    %193 = memref.load %arg2[%c10, %c0_85] : memref<16x4xf32, #tpu.memory_space<smem>>
    %194 = vector.broadcast %193 : f32 to vector<8x256xf32>
    %195 = arith.mulf %194, %0 : vector<8x256xf32>
    %c10_86 = arith.constant 10 : index
    %c1_87 = arith.constant 1 : index
    %196 = memref.load %arg2[%c10_86, %c1_87] : memref<16x4xf32, #tpu.memory_space<smem>>
    %197 = vector.broadcast %196 : f32 to vector<8x256xf32>
    %198 = arith.mulf %197, %1 : vector<8x256xf32>
    %199 = arith.addf %195, %198 : vector<8x256xf32>
    %c10_88 = arith.constant 10 : index
    %c2_89 = arith.constant 2 : index
    %200 = memref.load %arg2[%c10_88, %c2_89] : memref<16x4xf32, #tpu.memory_space<smem>>
    %201 = vector.broadcast %200 : f32 to vector<8x256xf32>
    %202 = arith.mulf %201, %2 : vector<8x256xf32>
    %203 = arith.addf %199, %202 : vector<8x256xf32>
    %c10_90 = arith.constant 10 : index
    %c3_91 = arith.constant 3 : index
    %204 = memref.load %arg2[%c10_90, %c3_91] : memref<16x4xf32, #tpu.memory_space<smem>>
    %205 = vector.broadcast %204 : f32 to vector<8x256xf32>
    %206 = arith.mulf %205, %3 : vector<8x256xf32>
    %207 = arith.addf %203, %206 : vector<8x256xf32>
    %c10_92 = arith.constant 10 : index
    %208 = memref.load %arg3[%c10_92] : memref<16xf32, #tpu.memory_space<smem>>
    %209 = vector.broadcast %208 : f32 to vector<8x256xf32>
    %210 = arith.addf %207, %209 : vector<8x256xf32>
    %211 = arith.maximumf %192, %210 : vector<8x256xf32>
    %c11 = arith.constant 11 : index
    %c0_93 = arith.constant 0 : index
    %212 = memref.load %arg2[%c11, %c0_93] : memref<16x4xf32, #tpu.memory_space<smem>>
    %213 = vector.broadcast %212 : f32 to vector<8x256xf32>
    %214 = arith.mulf %213, %0 : vector<8x256xf32>
    %c11_94 = arith.constant 11 : index
    %c1_95 = arith.constant 1 : index
    %215 = memref.load %arg2[%c11_94, %c1_95] : memref<16x4xf32, #tpu.memory_space<smem>>
    %216 = vector.broadcast %215 : f32 to vector<8x256xf32>
    %217 = arith.mulf %216, %1 : vector<8x256xf32>
    %218 = arith.addf %214, %217 : vector<8x256xf32>
    %c11_96 = arith.constant 11 : index
    %c2_97 = arith.constant 2 : index
    %219 = memref.load %arg2[%c11_96, %c2_97] : memref<16x4xf32, #tpu.memory_space<smem>>
    %220 = vector.broadcast %219 : f32 to vector<8x256xf32>
    %221 = arith.mulf %220, %2 : vector<8x256xf32>
    %222 = arith.addf %218, %221 : vector<8x256xf32>
    %c11_98 = arith.constant 11 : index
    %c3_99 = arith.constant 3 : index
    %223 = memref.load %arg2[%c11_98, %c3_99] : memref<16x4xf32, #tpu.memory_space<smem>>
    %224 = vector.broadcast %223 : f32 to vector<8x256xf32>
    %225 = arith.mulf %224, %3 : vector<8x256xf32>
    %226 = arith.addf %222, %225 : vector<8x256xf32>
    %c11_100 = arith.constant 11 : index
    %227 = memref.load %arg3[%c11_100] : memref<16xf32, #tpu.memory_space<smem>>
    %228 = vector.broadcast %227 : f32 to vector<8x256xf32>
    %229 = arith.addf %226, %228 : vector<8x256xf32>
    %230 = arith.maximumf %211, %229 : vector<8x256xf32>
    %c12 = arith.constant 12 : index
    %c0_101 = arith.constant 0 : index
    %231 = memref.load %arg2[%c12, %c0_101] : memref<16x4xf32, #tpu.memory_space<smem>>
    %232 = vector.broadcast %231 : f32 to vector<8x256xf32>
    %233 = arith.mulf %232, %0 : vector<8x256xf32>
    %c12_102 = arith.constant 12 : index
    %c1_103 = arith.constant 1 : index
    %234 = memref.load %arg2[%c12_102, %c1_103] : memref<16x4xf32, #tpu.memory_space<smem>>
    %235 = vector.broadcast %234 : f32 to vector<8x256xf32>
    %236 = arith.mulf %235, %1 : vector<8x256xf32>
    %237 = arith.addf %233, %236 : vector<8x256xf32>
    %c12_104 = arith.constant 12 : index
    %c2_105 = arith.constant 2 : index
    %238 = memref.load %arg2[%c12_104, %c2_105] : memref<16x4xf32, #tpu.memory_space<smem>>
    %239 = vector.broadcast %238 : f32 to vector<8x256xf32>
    %240 = arith.mulf %239, %2 : vector<8x256xf32>
    %241 = arith.addf %237, %240 : vector<8x256xf32>
    %c12_106 = arith.constant 12 : index
    %c3_107 = arith.constant 3 : index
    %242 = memref.load %arg2[%c12_106, %c3_107] : memref<16x4xf32, #tpu.memory_space<smem>>
    %243 = vector.broadcast %242 : f32 to vector<8x256xf32>
    %244 = arith.mulf %243, %3 : vector<8x256xf32>
    %245 = arith.addf %241, %244 : vector<8x256xf32>
    %c12_108 = arith.constant 12 : index
    %246 = memref.load %arg3[%c12_108] : memref<16xf32, #tpu.memory_space<smem>>
    %247 = vector.broadcast %246 : f32 to vector<8x256xf32>
    %248 = arith.addf %245, %247 : vector<8x256xf32>
    %249 = arith.maximumf %230, %248 : vector<8x256xf32>
    %c13 = arith.constant 13 : index
    %c0_109 = arith.constant 0 : index
    %250 = memref.load %arg2[%c13, %c0_109] : memref<16x4xf32, #tpu.memory_space<smem>>
    %251 = vector.broadcast %250 : f32 to vector<8x256xf32>
    %252 = arith.mulf %251, %0 : vector<8x256xf32>
    %c13_110 = arith.constant 13 : index
    %c1_111 = arith.constant 1 : index
    %253 = memref.load %arg2[%c13_110, %c1_111] : memref<16x4xf32, #tpu.memory_space<smem>>
    %254 = vector.broadcast %253 : f32 to vector<8x256xf32>
    %255 = arith.mulf %254, %1 : vector<8x256xf32>
    %256 = arith.addf %252, %255 : vector<8x256xf32>
    %c13_112 = arith.constant 13 : index
    %c2_113 = arith.constant 2 : index
    %257 = memref.load %arg2[%c13_112, %c2_113] : memref<16x4xf32, #tpu.memory_space<smem>>
    %258 = vector.broadcast %257 : f32 to vector<8x256xf32>
    %259 = arith.mulf %258, %2 : vector<8x256xf32>
    %260 = arith.addf %256, %259 : vector<8x256xf32>
    %c13_114 = arith.constant 13 : index
    %c3_115 = arith.constant 3 : index
    %261 = memref.load %arg2[%c13_114, %c3_115] : memref<16x4xf32, #tpu.memory_space<smem>>
    %262 = vector.broadcast %261 : f32 to vector<8x256xf32>
    %263 = arith.mulf %262, %3 : vector<8x256xf32>
    %264 = arith.addf %260, %263 : vector<8x256xf32>
    %c13_116 = arith.constant 13 : index
    %265 = memref.load %arg3[%c13_116] : memref<16xf32, #tpu.memory_space<smem>>
    %266 = vector.broadcast %265 : f32 to vector<8x256xf32>
    %267 = arith.addf %264, %266 : vector<8x256xf32>
    %268 = arith.maximumf %249, %267 : vector<8x256xf32>
    %c14 = arith.constant 14 : index
    %c0_117 = arith.constant 0 : index
    %269 = memref.load %arg2[%c14, %c0_117] : memref<16x4xf32, #tpu.memory_space<smem>>
    %270 = vector.broadcast %269 : f32 to vector<8x256xf32>
    %271 = arith.mulf %270, %0 : vector<8x256xf32>
    %c14_118 = arith.constant 14 : index
    %c1_119 = arith.constant 1 : index
    %272 = memref.load %arg2[%c14_118, %c1_119] : memref<16x4xf32, #tpu.memory_space<smem>>
    %273 = vector.broadcast %272 : f32 to vector<8x256xf32>
    %274 = arith.mulf %273, %1 : vector<8x256xf32>
    %275 = arith.addf %271, %274 : vector<8x256xf32>
    %c14_120 = arith.constant 14 : index
    %c2_121 = arith.constant 2 : index
    %276 = memref.load %arg2[%c14_120, %c2_121] : memref<16x4xf32, #tpu.memory_space<smem>>
    %277 = vector.broadcast %276 : f32 to vector<8x256xf32>
    %278 = arith.mulf %277, %2 : vector<8x256xf32>
    %279 = arith.addf %275, %278 : vector<8x256xf32>
    %c14_122 = arith.constant 14 : index
    %c3_123 = arith.constant 3 : index
    %280 = memref.load %arg2[%c14_122, %c3_123] : memref<16x4xf32, #tpu.memory_space<smem>>
    %281 = vector.broadcast %280 : f32 to vector<8x256xf32>
    %282 = arith.mulf %281, %3 : vector<8x256xf32>
    %283 = arith.addf %279, %282 : vector<8x256xf32>
    %c14_124 = arith.constant 14 : index
    %284 = memref.load %arg3[%c14_124] : memref<16xf32, #tpu.memory_space<smem>>
    %285 = vector.broadcast %284 : f32 to vector<8x256xf32>
    %286 = arith.addf %283, %285 : vector<8x256xf32>
    %287 = arith.maximumf %268, %286 : vector<8x256xf32>
    %c15 = arith.constant 15 : index
    %c0_125 = arith.constant 0 : index
    %288 = memref.load %arg2[%c15, %c0_125] : memref<16x4xf32, #tpu.memory_space<smem>>
    %289 = vector.broadcast %288 : f32 to vector<8x256xf32>
    %290 = arith.mulf %289, %0 : vector<8x256xf32>
    %c15_126 = arith.constant 15 : index
    %c1_127 = arith.constant 1 : index
    %291 = memref.load %arg2[%c15_126, %c1_127] : memref<16x4xf32, #tpu.memory_space<smem>>
    %292 = vector.broadcast %291 : f32 to vector<8x256xf32>
    %293 = arith.mulf %292, %1 : vector<8x256xf32>
    %294 = arith.addf %290, %293 : vector<8x256xf32>
    %c15_128 = arith.constant 15 : index
    %c2_129 = arith.constant 2 : index
    %295 = memref.load %arg2[%c15_128, %c2_129] : memref<16x4xf32, #tpu.memory_space<smem>>
    %296 = vector.broadcast %295 : f32 to vector<8x256xf32>
    %297 = arith.mulf %296, %2 : vector<8x256xf32>
    %298 = arith.addf %294, %297 : vector<8x256xf32>
    %c15_130 = arith.constant 15 : index
    %c3_131 = arith.constant 3 : index
    %299 = memref.load %arg2[%c15_130, %c3_131] : memref<16x4xf32, #tpu.memory_space<smem>>
    %300 = vector.broadcast %299 : f32 to vector<8x256xf32>
    %301 = arith.mulf %300, %3 : vector<8x256xf32>
    %302 = arith.addf %298, %301 : vector<8x256xf32>
    %c15_132 = arith.constant 15 : index
    %303 = memref.load %arg3[%c15_132] : memref<16xf32, #tpu.memory_space<smem>>
    %304 = vector.broadcast %303 : f32 to vector<8x256xf32>
    %305 = arith.addf %302, %304 : vector<8x256xf32>
    %306 = arith.maximumf %287, %305 : vector<8x256xf32>
    %c0_133 = arith.constant 0 : index
    %c0_134 = arith.constant 0 : index
    %307 = vector.load %arg6[%c0_133, %c0_134] : memref<8x272xf32, #tpu.memory_space<vmem>>, vector<8x256xf32>
    tpu.vector_store %arg6[%c0_133, %c0_134], %306 {strides = array<i32>} : memref<8x272xf32, #tpu.memory_space<vmem>>, vector<8x256xf32>,
    %c0_135 = arith.constant 0 : index
    %c0_136 = arith.constant 0 : index
    %308 = vector.load %arg1[%c0_135, %c0_136] : memref<8x1024xf32, #tpu.memory_space<vmem>>, vector<8x256xf32>
    %c0_137 = arith.constant 0 : index
    %c256_138 = arith.constant 256 : index
    %309 = vector.load %arg1[%c0_137, %c256_138] : memref<8x1024xf32, #tpu.memory_space<vmem>>, vector<8x256xf32>
    %c0_139 = arith.constant 0 : index
    %c512_140 = arith.constant 512 : index
    %310 = vector.load %arg1[%c0_139, %c512_140] : memref<8x1024xf32, #tpu.memory_space<vmem>>, vector<8x256xf32>
    %c0_141 = arith.constant 0 : index
    %c768_142 = arith.constant 768 : index
    %311 = vector.load %arg1[%c0_141, %c768_142] : memref<8x1024xf32, #tpu.memory_space<vmem>>, vector<8x256xf32>
    %312 = arith.mulf %308, %310 : vector<8x256xf32>
    %cst = arith.constant dense<0.000000e+00> : vector<8xf32>
    %313 = vector.multi_reduction <add>, %312, %cst [1] : vector<8x256xf32> to vector<8xf32>
    %314 = vector.shape_cast %313 : vector<8xf32> to vector<8x1xf32>
    %315 = arith.mulf %308, %311 : vector<8x256xf32>
    %cst_143 = arith.constant dense<0.000000e+00> : vector<8xf32>
    %316 = vector.multi_reduction <add>, %315, %cst_143 [1] : vector<8x256xf32> to vector<8xf32>
    %317 = vector.shape_cast %316 : vector<8xf32> to vector<8x1xf32>
    %318 = arith.mulf %309, %310 : vector<8x256xf32>
    %cst_144 = arith.constant dense<0.000000e+00> : vector<8xf32>
    %319 = vector.multi_reduction <add>, %318, %cst_144 [1] : vector<8x256xf32> to vector<8xf32>
    %320 = vector.shape_cast %319 : vector<8xf32> to vector<8x1xf32>
    %321 = arith.mulf %309, %311 : vector<8x256xf32>
    %cst_145 = arith.constant dense<0.000000e+00> : vector<8xf32>
    %322 = vector.multi_reduction <add>, %321, %cst_145 [1] : vector<8x256xf32> to vector<8xf32>
    %323 = vector.shape_cast %322 : vector<8xf32> to vector<8x1xf32>
    %324 = arith.mulf %308, %308 : vector<8x256xf32>
    %cst_146 = arith.constant dense<0.000000e+00> : vector<8xf32>
    %325 = vector.multi_reduction <add>, %324, %cst_146 [1] : vector<8x256xf32> to vector<8xf32>
    %326 = vector.shape_cast %325 : vector<8xf32> to vector<8x1xf32>
    %327 = arith.mulf %308, %309 : vector<8x256xf32>
    %cst_147 = arith.constant dense<0.000000e+00> : vector<8xf32>
    %328 = vector.multi_reduction <add>, %327, %cst_147 [1] : vector<8x256xf32> to vector<8xf32>
    %329 = vector.shape_cast %328 : vector<8xf32> to vector<8x1xf32>
    %330 = arith.mulf %309, %309 : vector<8x256xf32>
    %cst_148 = arith.constant dense<0.000000e+00> : vector<8xf32>
    %331 = vector.multi_reduction <add>, %330, %cst_148 [1] : vector<8x256xf32> to vector<8xf32>
    %332 = vector.shape_cast %331 : vector<8xf32> to vector<8x1xf32>
    %333 = arith.mulf %310, %310 : vector<8x256xf32>
    %cst_149 = arith.constant dense<0.000000e+00> : vector<8xf32>
    %334 = vector.multi_reduction <add>, %333, %cst_149 [1] : vector<8x256xf32> to vector<8xf32>
    %335 = vector.shape_cast %334 : vector<8xf32> to vector<8x1xf32>
    %336 = arith.mulf %310, %311 : vector<8x256xf32>
    %cst_150 = arith.constant dense<0.000000e+00> : vector<8xf32>
    %337 = vector.multi_reduction <add>, %336, %cst_150 [1] : vector<8x256xf32> to vector<8xf32>
    %338 = vector.shape_cast %337 : vector<8xf32> to vector<8x1xf32>
    %339 = arith.mulf %311, %311 : vector<8x256xf32>
    %cst_151 = arith.constant dense<0.000000e+00> : vector<8xf32>
    %340 = vector.multi_reduction <add>, %339, %cst_151 [1] : vector<8x256xf32> to vector<8xf32>
    %341 = vector.shape_cast %340 : vector<8xf32> to vector<8x1xf32>
    %cst_152 = arith.constant dense<0.000000e+00> : vector<8xf32>
    %342 = vector.multi_reduction <add>, %308, %cst_152 [1] : vector<8x256xf32> to vector<8xf32>
    %343 = vector.shape_cast %342 : vector<8xf32> to vector<8x1xf32>
    %cst_153 = arith.constant dense<0.000000e+00> : vector<8xf32>
    %344 = vector.multi_reduction <add>, %309, %cst_153 [1] : vector<8x256xf32> to vector<8xf32>
    %345 = vector.shape_cast %344 : vector<8xf32> to vector<8x1xf32>
    %cst_154 = arith.constant dense<0.000000e+00> : vector<8xf32>
    %346 = vector.multi_reduction <add>, %310, %cst_154 [1] : vector<8x256xf32> to vector<8xf32>
    %347 = vector.shape_cast %346 : vector<8xf32> to vector<8x1xf32>
    %cst_155 = arith.constant dense<0.000000e+00> : vector<8xf32>
    %348 = vector.multi_reduction <add>, %311, %cst_155 [1] : vector<8x256xf32> to vector<8xf32>
    %349 = vector.shape_cast %348 : vector<8xf32> to vector<8x1xf32>
    %c0_156 = arith.constant 0 : index
    %c0_157 = arith.constant 0 : index
    %350 = vector.load %arg4[%c0_156, %c0_157] : memref<2x16xf32, #tpu.memory_space<vmem>>, vector<2x16xf32>
    %c0_158 = arith.constant 0 : index
    %c0_159 = arith.constant 0 : index
    %351 = vector.load %arg5[%c0_158, %c0_159] : memref<1x16xf32, #tpu.memory_space<vmem>>, vector<1x16xf32>
    %352 = vector.extract_strided_slice %350 {offsets = [0, 0], sizes = [1, 16], strides = [1, 1]} : vector<2x16xf32> to vector<1x16xf32>
    %353 = vector.extract_strided_slice %350 {offsets = [1, 0], sizes = [1, 16], strides = [1, 1]} : vector<2x16xf32> to vector<1x16xf32>
    %354 = arith.mulf %352, %352 : vector<1x16xf32>
    %355 = vector.broadcast %354 : vector<1x16xf32> to vector<8x16xf32>
    %356 = vector.broadcast %314 : vector<8x1xf32> to vector<8x16xf32>
    %357 = arith.mulf %355, %356 : vector<8x16xf32>
    %358 = arith.mulf %352, %353 : vector<1x16xf32>
    %359 = vector.broadcast %358 : vector<1x16xf32> to vector<8x16xf32>
    %360 = vector.broadcast %317 : vector<8x1xf32> to vector<8x16xf32>
    %361 = arith.mulf %359, %360 : vector<8x16xf32>
    %362 = arith.addf %357, %361 : vector<8x16xf32>
    %363 = arith.mulf %352, %352 : vector<1x16xf32>
    %cst_160 = arith.constant 1.000000e+00 : f32
    %364 = vector.broadcast %cst_160 : f32 to vector<1x16xf32>
    %365 = arith.mulf %363, %364 : vector<1x16xf32>
    %366 = vector.broadcast %365 : vector<1x16xf32> to vector<8x16xf32>
    %367 = vector.broadcast %326 : vector<8x1xf32> to vector<8x16xf32>
    %368 = arith.mulf %366, %367 : vector<8x16xf32>
    %369 = vector.broadcast %365 : vector<1x16xf32> to vector<8x16xf32>
    %370 = vector.broadcast %335 : vector<8x1xf32> to vector<8x16xf32>
    %371 = arith.mulf %369, %370 : vector<8x16xf32>
    %372 = arith.mulf %352, %353 : vector<1x16xf32>
    %cst_161 = arith.constant 2.000000e+00 : f32
    %373 = vector.broadcast %cst_161 : f32 to vector<1x16xf32>
    %374 = arith.mulf %372, %373 : vector<1x16xf32>
    %375 = vector.broadcast %374 : vector<1x16xf32> to vector<8x16xf32>
    %376 = vector.broadcast %329 : vector<8x1xf32> to vector<8x16xf32>
    %377 = arith.mulf %375, %376 : vector<8x16xf32>
    %378 = arith.addf %368, %377 : vector<8x16xf32>
    %379 = vector.broadcast %374 : vector<1x16xf32> to vector<8x16xf32>
    %380 = vector.broadcast %338 : vector<8x1xf32> to vector<8x16xf32>
    %381 = arith.mulf %379, %380 : vector<8x16xf32>
    %382 = arith.addf %371, %381 : vector<8x16xf32>
    %383 = arith.mulf %351, %352 : vector<1x16xf32>
    %384 = arith.addf %343, %347 : vector<8x1xf32>
    %385 = vector.broadcast %383 : vector<1x16xf32> to vector<8x16xf32>
    %386 = vector.broadcast %384 : vector<8x1xf32> to vector<8x16xf32>
    %387 = arith.mulf %385, %386 : vector<8x16xf32>
    %388 = arith.addf %362, %387 : vector<8x16xf32>
    %cst_162 = arith.constant 2.000000e+00 : f32
    %389 = vector.broadcast %cst_162 : f32 to vector<1x16xf32>
    %390 = arith.mulf %389, %383 : vector<1x16xf32>
    %391 = vector.broadcast %390 : vector<1x16xf32> to vector<8x16xf32>
    %392 = vector.broadcast %343 : vector<8x1xf32> to vector<8x16xf32>
    %393 = arith.mulf %391, %392 : vector<8x16xf32>
    %394 = arith.addf %378, %393 : vector<8x16xf32>
    %cst_163 = arith.constant 2.000000e+00 : f32
    %395 = vector.broadcast %cst_163 : f32 to vector<1x16xf32>
    %396 = arith.mulf %395, %383 : vector<1x16xf32>
    %397 = vector.broadcast %396 : vector<1x16xf32> to vector<8x16xf32>
    %398 = vector.broadcast %347 : vector<8x1xf32> to vector<8x16xf32>
    %399 = arith.mulf %397, %398 : vector<8x16xf32>
    %400 = arith.addf %382, %399 : vector<8x16xf32>
    %401 = arith.mulf %353, %352 : vector<1x16xf32>
    %402 = vector.broadcast %401 : vector<1x16xf32> to vector<8x16xf32>
    %403 = vector.broadcast %320 : vector<8x1xf32> to vector<8x16xf32>
    %404 = arith.mulf %402, %403 : vector<8x16xf32>
    %405 = arith.addf %388, %404 : vector<8x16xf32>
    %406 = arith.mulf %353, %353 : vector<1x16xf32>
    %407 = vector.broadcast %406 : vector<1x16xf32> to vector<8x16xf32>
    %408 = vector.broadcast %323 : vector<8x1xf32> to vector<8x16xf32>
    %409 = arith.mulf %407, %408 : vector<8x16xf32>
    %410 = arith.addf %405, %409 : vector<8x16xf32>
    %411 = arith.mulf %353, %353 : vector<1x16xf32>
    %cst_164 = arith.constant 1.000000e+00 : f32
    %412 = vector.broadcast %cst_164 : f32 to vector<1x16xf32>
    %413 = arith.mulf %411, %412 : vector<1x16xf32>
    %414 = vector.broadcast %413 : vector<1x16xf32> to vector<8x16xf32>
    %415 = vector.broadcast %332 : vector<8x1xf32> to vector<8x16xf32>
    %416 = arith.mulf %414, %415 : vector<8x16xf32>
    %417 = arith.addf %394, %416 : vector<8x16xf32>
    %418 = vector.broadcast %413 : vector<1x16xf32> to vector<8x16xf32>
    %419 = vector.broadcast %341 : vector<8x1xf32> to vector<8x16xf32>
    %420 = arith.mulf %418, %419 : vector<8x16xf32>
    %421 = arith.addf %400, %420 : vector<8x16xf32>
    %422 = arith.mulf %351, %353 : vector<1x16xf32>
    %423 = arith.addf %345, %349 : vector<8x1xf32>
    %424 = vector.broadcast %422 : vector<1x16xf32> to vector<8x16xf32>
    %425 = vector.broadcast %423 : vector<8x1xf32> to vector<8x16xf32>
    %426 = arith.mulf %424, %425 : vector<8x16xf32>
    %427 = arith.addf %410, %426 : vector<8x16xf32>
    %cst_165 = arith.constant 2.000000e+00 : f32
    %428 = vector.broadcast %cst_165 : f32 to vector<1x16xf32>
    %429 = arith.mulf %428, %422 : vector<1x16xf32>
    %430 = vector.broadcast %429 : vector<1x16xf32> to vector<8x16xf32>
    %431 = vector.broadcast %345 : vector<8x1xf32> to vector<8x16xf32>
    %432 = arith.mulf %430, %431 : vector<8x16xf32>
    %433 = arith.addf %417, %432 : vector<8x16xf32>
    %cst_166 = arith.constant 2.000000e+00 : f32
    %434 = vector.broadcast %cst_166 : f32 to vector<1x16xf32>
    %435 = arith.mulf %434, %422 : vector<1x16xf32>
    %436 = vector.broadcast %435 : vector<1x16xf32> to vector<8x16xf32>
    %437 = vector.broadcast %349 : vector<8x1xf32> to vector<8x16xf32>
    %438 = arith.mulf %436, %437 : vector<8x16xf32>
    %439 = arith.addf %421, %438 : vector<8x16xf32>
    %440 = arith.mulf %351, %351 : vector<1x16xf32>
    %cst_167 = arith.constant 2.560000e+02 : f32
    %441 = vector.broadcast %cst_167 : f32 to vector<1x16xf32>
    %442 = arith.mulf %440, %441 : vector<1x16xf32>
    %443 = vector.broadcast %442 : vector<1x16xf32> to vector<8x16xf32>
    %444 = arith.addf %427, %443 : vector<8x16xf32>
    %445 = vector.broadcast %442 : vector<1x16xf32> to vector<8x16xf32>
    %446 = arith.addf %433, %445 : vector<8x16xf32>
    %447 = vector.broadcast %442 : vector<1x16xf32> to vector<8x16xf32>
    %448 = arith.addf %439, %447 : vector<8x16xf32>
    %449 = arith.mulf %446, %448 : vector<8x16xf32>
    %cst_168 = arith.constant 1.000000e-16 : f32
    %450 = vector.broadcast %cst_168 : f32 to vector<8x16xf32>
    %451 = arith.maximumf %449, %450 : vector<8x16xf32>
    %452 = math.rsqrt %451 : vector<8x16xf32>
    %453 = arith.mulf %444, %452 : vector<8x16xf32>
    %c0_169 = arith.constant 0 : index
    %c256_170 = arith.constant 256 : index
    %454 = vector.load %arg6[%c0_169, %c256_170] : memref<8x272xf32, #tpu.memory_space<vmem>>, vector<8x16xf32>
    tpu.vector_store %arg6[%c0_169, %c256_170], %453 {strides = array<i32>} : memref<8x272xf32, #tpu.memory_space<vmem>>, vector<8x16xf32>,
    return
  }
  func.func @transform_0(%arg0: i32) -> (i32, i32) {
    %c0_i32 = arith.constant 0 : i32
    %c0_i32_0 = arith.constant 0 : i32
    return %arg0, %c0_i32 : i32, i32
  }
  func.func @transform_1(%arg0: i32) -> (i32, i32) {
    %c0_i32 = arith.constant 0 : i32
    %c0_i32_0 = arith.constant 0 : i32
    %c0_i32_1 = arith.constant 0 : i32
    return %c0_i32, %c0_i32_0 : i32, i32
  }
  func.func @transform_2(%arg0: i32) -> i32 {
    %c0_i32 = arith.constant 0 : i32
    %c0_i32_0 = arith.constant 0 : i32
    return %c0_i32 : i32
  }
  func.func @transform_3(%arg0: i32) -> (i32, i32) {
    %c0_i32 = arith.constant 0 : i32
    %c0_i32_0 = arith.constant 0 : i32
    %c0_i32_1 = arith.constant 0 : i32
    return %c0_i32, %c0_i32_0 : i32, i32
  }
  func.func @transform_4(%arg0: i32) -> (i32, i32) {
    %c0_i32 = arith.constant 0 : i32
    %c0_i32_0 = arith.constant 0 : i32
    %c0_i32_1 = arith.constant 0 : i32
    return %c0_i32, %c0_i32_0 : i32, i32
  }
  func.func @transform_5(%arg0: i32) -> (i32, i32) {
    %c0_i32 = arith.constant 0 : i32
    %c0_i32_0 = arith.constant 0 : i32
    return %arg0, %c0_i32 : i32, i32
  }
}

</mosaic_0001>

<llo_original>
// kernel: tpu_custom_call.1
$region0: #{tpu_custom_call.1}
  #allocation0 [shape = 'u32[]', space=smem, size = 0x4, offset = 0x4, fixed_abs, tag = 'smem constant byte address 0x4 - core index']
  #allocation1 [shape = 'u32[144,128]{1,0:T(1,128)}', space=vmem, size = 0x12000, scoped, tag = 'internal scratch']
  %s0 = inlined_call_operand.hbm [shape: f32[8,1024], index: 0, kind: input, shape index: {}]
  %s1 = inlined_call_operand.vmem [shape: f32[16,4], index: 1, kind: input, shape index: {}]
  %s2 = inlined_call_operand.vmem [shape: f32[16], index: 2, kind: input, shape index: {}]
  %s3 = inlined_call_operand.vmem [shape: f32[2,16], index: 3, kind: input, shape index: {}]
  %s4 = inlined_call_operand.vmem [shape: f32[1,16], index: 4, kind: input, shape index: {}]
  %s5 = inlined_call_operand.hbm [shape: f32[8,272], index: 5, kind: output, shape index: {}]
  %s6 = sld [smem:[#allocation0]]
  $region42: #{tpu_custom_call.1} parent=0
    _
  %s8 = ssub.s32 1, %s6
  %s9 = scalar_select 0, %s8, %s6
  $region1: #{tpu_custom_call.1} parent=0
    #allocation2 [shape = 'u8[32768]{0}', space=vmem, size = 0x8000, scoped, tag = 'input window, operand 0, single buffered']
    #allocation3 [shape = 's32[1]{0}', space=sflag, size = 0x4, scoped, tag = 'scoped memory for tpu_custom_call.1']
    #allocation4 [shape = 's32[1]{0}', space=sflag, size = 0x4, scoped, tag = 'scoped memory for tpu_custom_call.1']
    #allocation5 [shape = 's32[1]{0}', space=sflag, size = 0x4, scoped, tag = 'scoped memory for tpu_custom_call.1']
    #allocation6 [shape = 'u8[8192]{0}', space=smem, size = 0x2000, scoped, tag = 'input window, operand 1, single buffered']
    #allocation7 [shape = 'u8[512]{0}', space=smem, size = 0x200, scoped, tag = 'input window, operand 2, single buffered']
    #allocation8 [shape = 's32[1]{0}', space=sflag, size = 0x4, scoped, tag = 'scoped memory for tpu_custom_call.1']
    #allocation9 [shape = 'u8[12288]{0}', space=vmem, size = 0x3000, scoped, tag = 'output window, operand 0, single buffered']
    %10 = vsyncpa [#allocation3], 0
    %11 = vsyncpa [#allocation5], 0
    %12 = vsyncpa [#allocation8], 0
    %13 = vsyncpa [#allocation4], 0
    // Predicated region
    $region2: #{tpu_custom_call.1} parent=1 // pred_check
      _
    $region3: #{tpu_custom_call.1} parent=1 // pred_check_branch
      %15 = sbr.rel (0) target = $region5
    $region4: #{tpu_custom_call.1} parent=1 // pred_region
      %s17 = ssub.s32 1024, 1024
      %18 = vsyncadd [#allocation3], %s17
      %s20 = sshll.u32 [#allocation2], 4
      %s21 = int_to_ptr.vmem [resolvable:$true] %s20
      %23 = dma.hbm_to_vmem [thread:$0]  %s0, 1024, %s21, [#allocation3]
    $region5: #{tpu_custom_call.1} parent=1 // pred_fallthru
      _
    // Predicated region
    $region6: #{tpu_custom_call.1} parent=1 // pred_check
      _
    $region7: #{tpu_custom_call.1} parent=1 // pred_check_branch
      %25 = sbr.rel (0) target = $region9
    $region8: #{tpu_custom_call.1} parent=1 // pred_region
      %s27 = ssub.s32 256, 256
      %28 = vsyncadd [#allocation5], %s27
      %s29 = sshll.u32 %s1, 4
      %s30 = int_to_ptr.vmem [resolvable:$true] %s29
      %35 = dma.vmem_to_smem %s30, 256, [#allocation6], [#allocation5], 128, 128, 8
    $region9: #{tpu_custom_call.1} parent=1 // pred_fallthru
      _
    // Predicated region
    $region10: #{tpu_custom_call.1} parent=1 // pred_check
      _
    $region11: #{tpu_custom_call.1} parent=1 // pred_check_branch
      %37 = sbr.rel (0) target = $region13
    $region12: #{tpu_custom_call.1} parent=1 // pred_region
      %s39 = ssub.s32 16, 16
      %40 = vsyncadd [#allocation8], %s39
      %s42 = sshll.u32 %s2, 4
      %s43 = int_to_ptr.vmem [resolvable:$true] %s42
      %45 = dma.vmem_to_smem %s43, 16, [#allocation7], [#allocation8]
    $region13: #{tpu_custom_call.1} parent=1 // pred_fallthru
      _
    // Predicated region
    $region14: #{tpu_custom_call.1} parent=1 // pred_check
      _
    $region15: #{tpu_custom_call.1} parent=1 // pred_check_branch
      %47 = sbr.rel (0) target = $region17
    $region16: #{tpu_custom_call.1} parent=1 // pred_region
      _
    $region17: #{tpu_custom_call.1} parent=1 // pred_fallthru
      _
    // Predicated region
    $region18: #{tpu_custom_call.1} parent=1 // pred_check
      _
    $region19: #{tpu_custom_call.1} parent=1 // pred_check_branch
      %49 = sbr.rel (0) target = $region21
    $region20: #{tpu_custom_call.1} parent=1 // pred_region
      _
    $region21: #{tpu_custom_call.1} parent=1 // pred_fallthru
      _
    // Predicated region
    $region22: #{tpu_custom_call.1} parent=1 // pred_check
      _
    $region23: #{tpu_custom_call.1} parent=1 // pred_check_branch
      %51 = sbr.rel (0) target = $region25
    $region24: #{tpu_custom_call.1} parent=1 // pred_region
      %52 = dma.done [#allocation3], 1024
    $region25: #{tpu_custom_call.1} parent=1 // pred_fallthru
      _
    // Predicated region
    $region26: #{tpu_custom_call.1} parent=1 // pred_check
      _
    $region27: #{tpu_custom_call.1} parent=1 // pred_check_branch
      %54 = sbr.rel (0) target = $region29
    $region28: #{tpu_custom_call.1} parent=1 // pred_region
      %55 = dma.done [#allocation5], 256
    $region29: #{tpu_custom_call.1} parent=1 // pred_fallthru
      _
    // Predicated region
    $region30: #{tpu_custom_call.1} parent=1 // pred_check
      _
    $region31: #{tpu_custom_call.1} parent=1 // pred_check_branch
      %57 = sbr.rel (0) target = $region33
    $region32: #{tpu_custom_call.1} parent=1 // pred_region
      %58 = dma.done [#allocation8], 16
    $region33: #{tpu_custom_call.1} parent=1 // pred_fallthru
      _
    %59 = sfence
    %v60 = vld [vmem:[#allocation2] sm:$0xff]
    %v61 = vld [vmem:[#allocation2 + $0x8] sm:$0xff]
    %v62 = vld [vmem:[#allocation2 + $0x10] sm:$0xff]
    %v63 = vld [vmem:[#allocation2 + $0x18] sm:$0xff]
    %v64 = vld [vmem:[#allocation2 + $0x20] sm:$0xff]
    %v65 = vld [vmem:[#allocation2 + $0x28] sm:$0xff]
    %v66 = vld [vmem:[#allocation2 + $0x30] sm:$0xff]
    %v67 = vld [vmem:[#allocation2 + $0x38] sm:$0xff]
    %s68 = sld [smem:[#allocation6]]
    %v69 = vstv %s68
    %v70 = vmul.f32 %v69, %v60
    %v71 = vmul.f32 %v69, %v61
    %s72 = sld [smem:[#allocation6 + $0x1]]
    %v73 = vstv %s72
    %v74 = vmul.f32 %v73, %v62
    %v75 = vmul.f32 %v73, %v63
    %v76 = vadd.f32 %v70, %v74
    %v77 = vadd.f32 %v71, %v75
    %s78 = sld [smem:[#allocation6 + $0x2]]
    %v79 = vstv %s78
    %v80 = vmul.f32 %v79, %v64
    %v81 = vmul.f32 %v79, %v65
    %v82 = vadd.f32 %v76, %v80
    %v83 = vadd.f32 %v77, %v81
    %s84 = sld [smem:[#allocation6 + $0x3]]
    %v85 = vstv %s84
    %v86 = vmul.f32 %v85, %v66
    %v87 = vmul.f32 %v85, %v67
    %v88 = vadd.f32 %v82, %v86
    %v89 = vadd.f32 %v83, %v87
    %s90 = sld [smem:[#allocation7]]
    %v91 = vstv %s90
    %v92 = vadd.f32 %v88, %v91
    %v93 = vadd.f32 %v89, %v91
    %s94 = sld [smem:[#allocation6 + $0x80]]
    %v95 = vstv %s94
    %v96 = vmul.f32 %v95, %v60
    %v97 = vmul.f32 %v95, %v61
    %s98 = sld [smem:[#allocation6 + $0x81]]
    %v99 = vstv %s98
    %v100 = vmul.f32 %v99, %v62
    %v101 = vmul.f32 %v99, %v63
    %v102 = vadd.f32 %v96, %v100
    %v103 = vadd.f32 %v97, %v101
    %s104 = sld [smem:[#allocation6 + $0x82]]
    %v105 = vstv %s104
    %v106 = vmul.f32 %v105, %v64
    %v107 = vmul.f32 %v105, %v65
    %v108 = vadd.f32 %v102, %v106
    %v109 = vadd.f32 %v103, %v107
    %s110 = sld [smem:[#allocation6 + $0x83]]
    %v111 = vstv %s110
    %v112 = vmul.f32 %v111, %v66
    %v113 = vmul.f32 %v111, %v67
    %v114 = vadd.f32 %v108, %v112
    %v115 = vadd.f32 %v109, %v113
    %s116 = sld [smem:[#allocation7 + $0x1]]
    %v117 = vstv %s116
    %v118 = vadd.f32 %v114, %v117
    %v119 = vadd.f32 %v115, %v117
    %v120 = vmax.f32 %v92, %v118
    %v121 = vmax.f32 %v93, %v119
    %s122 = sld [smem:[#allocation6 + $0x100]]
    %v123 = vstv %s122
    %v124 = vmul.f32 %v123, %v60
    %v125 = vmul.f32 %v123, %v61
    %s126 = sld [smem:[#allocation6 + $0x101]]
    %v127 = vstv %s126
    %v128 = vmul.f32 %v127, %v62
    %v129 = vmul.f32 %v127, %v63
    %v130 = vadd.f32 %v124, %v128
    %v131 = vadd.f32 %v125, %v129
    %s132 = sld [smem:[#allocation6 + $0x102]]
    %v133 = vstv %s132
    %v134 = vmul.f32 %v133, %v64
    %v135 = vmul.f32 %v133, %v65
    %v136 = vadd.f32 %v130, %v134
    %v137 = vadd.f32 %v131, %v135
    %s138 = sld [smem:[#allocation6 + $0x103]]
    %v139 = vstv %s138
    %v140 = vmul.f32 %v139, %v66
    %v141 = vmul.f32 %v139, %v67
    %v142 = vadd.f32 %v136, %v140
    %v143 = vadd.f32 %v137, %v141
    %s144 = sld [smem:[#allocation7 + $0x2]]
    %v145 = vstv %s144
    %v146 = vadd.f32 %v142, %v145
    %v147 = vadd.f32 %v143, %v145
    %v148 = vmax.f32 %v120, %v146
    %v149 = vmax.f32 %v121, %v147
    %s150 = sld [smem:[#allocation6 + $0x180]]
    %v151 = vstv %s150
    %v152 = vmul.f32 %v151, %v60
    %v153 = vmul.f32 %v151, %v61
    %s154 = sld [smem:[#allocation6 + $0x181]]
    %v155 = vstv %s154
    %v156 = vmul.f32 %v155, %v62
    %v157 = vmul.f32 %v155, %v63
    %v158 = vadd.f32 %v152, %v156
    %v159 = vadd.f32 %v153, %v157
    %s160 = sld [smem:[#allocation6 + $0x182]]
    %v161 = vstv %s160
    %v162 = vmul.f32 %v161, %v64
    %v163 = vmul.f32 %v161, %v65
    %v164 = vadd.f32 %v158, %v162
    %v165 = vadd.f32 %v159, %v163
    %s166 = sld [smem:[#allocation6 + $0x183]]
    %v167 = vstv %s166
    %v168 = vmul.f32 %v167, %v66
    %v169 = vmul.f32 %v167, %v67
    %v170 = vadd.f32 %v164, %v168
    %v171 = vadd.f32 %v165, %v169
    %s172 = sld [smem:[#allocation7 + $0x3]]
    %v173 = vstv %s172
    %v174 = vadd.f32 %v170, %v173
    %v175 = vadd.f32 %v171, %v173
    %v176 = vmax.f32 %v148, %v174
    %v177 = vmax.f32 %v149, %v175
    %s178 = sld [smem:[#allocation6 + $0x200]]
    %v179 = vstv %s178
    %v180 = vmul.f32 %v179, %v60
    %v181 = vmul.f32 %v179, %v61
    %s182 = sld [smem:[#allocation6 + $0x201]]
    %v183 = vstv %s182
    %v184 = vmul.f32 %v183, %v62
    %v185 = vmul.f32 %v183, %v63
    %v186 = vadd.f32 %v180, %v184
    %v187 = vadd.f32 %v181, %v185
    %s188 = sld [smem:[#allocation6 + $0x202]]
    %v189 = vstv %s188
    %v190 = vmul.f32 %v189, %v64
    %v191 = vmul.f32 %v189, %v65
    %v192 = vadd.f32 %v186, %v190
    %v193 = vadd.f32 %v187, %v191
    %s194 = sld [smem:[#allocation6 + $0x203]]
    %v195 = vstv %s194
    %v196 = vmul.f32 %v195, %v66
    %v197 = vmul.f32 %v195, %v67
    %v198 = vadd.f32 %v192, %v196
    %v199 = vadd.f32 %v193, %v197
    %s200 = sld [smem:[#allocation7 + $0x4]]
    %v201 = vstv %s200
    %v202 = vadd.f32 %v198, %v201
    %v203 = vadd.f32 %v199, %v201
    %v204 = vmax.f32 %v176, %v202
    %v205 = vmax.f32 %v177, %v203
    %s206 = sld [smem:[#allocation6 + $0x280]]
    %v207 = vstv %s206
    %v208 = vmul.f32 %v207, %v60
    %v209 = vmul.f32 %v207, %v61
    %s210 = sld [smem:[#allocation6 + $0x281]]
    %v211 = vstv %s210
    %v212 = vmul.f32 %v211, %v62
    %v213 = vmul.f32 %v211, %v63
    %v214 = vadd.f32 %v208, %v212
    %v215 = vadd.f32 %v209, %v213
    %s216 = sld [smem:[#allocation6 + $0x282]]
    %v217 = vstv %s216
    %v218 = vmul.f32 %v217, %v64
    %v219 = vmul.f32 %v217, %v65
    %v220 = vadd.f32 %v214, %v218
    %v221 = vadd.f32 %v215, %v219
    %s222 = sld [smem:[#allocation6 + $0x283]]
    %v223 = vstv %s222
    %v224 = vmul.f32 %v223, %v66
    %v225 = vmul.f32 %v223, %v67
    %v226 = vadd.f32 %v220, %v224
    %v227 = vadd.f32 %v221, %v225
    %s228 = sld [smem:[#allocation7 + $0x5]]
    %v229 = vstv %s228
    %v230 = vadd.f32 %v226, %v229
    %v231 = vadd.f32 %v227, %v229
    %v232 = vmax.f32 %v204, %v230
    %v233 = vmax.f32 %v205, %v231
    %s234 = sld [smem:[#allocation6 + $0x300]]
    %v235 = vstv %s234
    %v236 = vmul.f32 %v235, %v60
    %v237 = vmul.f32 %v235, %v61
    %s238 = sld [smem:[#allocation6 + $0x301]]
    %v239 = vstv %s238
    %v240 = vmul.f32 %v239, %v62
    %v241 = vmul.f32 %v239, %v63
    %v242 = vadd.f32 %v236, %v240
    %v243 = vadd.f32 %v237, %v241
    %s244 = sld [smem:[#allocation6 + $0x302]]
    %v245 = vstv %s244
    %v246 = vmul.f32 %v245, %v64
    %v247 = vmul.f32 %v245, %v65
    %v248 = vadd.f32 %v242, %v246
    %v249 = vadd.f32 %v243, %v247
    %s250 = sld [smem:[#allocation6 + $0x303]]
    %v251 = vstv %s250
    %v252 = vmul.f32 %v251, %v66
    %v253 = vmul.f32 %v251, %v67
    %v254 = vadd.f32 %v248, %v252
    %v255 = vadd.f32 %v249, %v253
    %s256 = sld [smem:[#allocation7 + $0x6]]
    %v257 = vstv %s256
    %v258 = vadd.f32 %v254, %v257
    %v259 = vadd.f32 %v255, %v257
    %v260 = vmax.f32 %v232, %v258
    %v261 = vmax.f32 %v233, %v259
    %s262 = sld [smem:[#allocation6 + $0x380]]
    %v263 = vstv %s262
    %v264 = vmul.f32 %v263, %v60
    %v265 = vmul.f32 %v263, %v61
    %s266 = sld [smem:[#allocation6 + $0x381]]
    %v267 = vstv %s266
    %v268 = vmul.f32 %v267, %v62
    %v269 = vmul.f32 %v267, %v63
    %v270 = vadd.f32 %v264, %v268
    %v271 = vadd.f32 %v265, %v269
    %s272 = sld [smem:[#allocation6 + $0x382]]
    %v273 = vstv %s272
    %v274 = vmul.f32 %v273, %v64
    %v275 = vmul.f32 %v273, %v65
    %v276 = vadd.f32 %v270, %v274
    %v277 = vadd.f32 %v271, %v275
    %s278 = sld [smem:[#allocation6 + $0x383]]
    %v279 = vstv %s278
    %v280 = vmul.f32 %v279, %v66
    %v281 = vmul.f32 %v279, %v67
    %v282 = vadd.f32 %v276, %v280
    %v283 = vadd.f32 %v277, %v281
    %s284 = sld [smem:[#allocation7 + $0x7]]
    %v285 = vstv %s284
    %v286 = vadd.f32 %v282, %v285
    %v287 = vadd.f32 %v283, %v285
    %v288 = vmax.f32 %v260, %v286
    %v289 = vmax.f32 %v261, %v287
    %s290 = sld [smem:[#allocation6 + $0x400]]
    %v291 = vstv %s290
    %v292 = vmul.f32 %v291, %v60
    %v293 = vmul.f32 %v291, %v61
    %s294 = sld [smem:[#allocation6 + $0x401]]
    %v295 = vstv %s294
    %v296 = vmul.f32 %v295, %v62
    %v297 = vmul.f32 %v295, %v63
    %v298 = vadd.f32 %v292, %v296
    %v299 = vadd.f32 %v293, %v297
    %s300 = sld [smem:[#allocation6 + $0x402]]
    %v301 = vstv %s300
    %v302 = vmul.f32 %v301, %v64
    %v303 = vmul.f32 %v301, %v65
    %v304 = vadd.f32 %v298, %v302
    %v305 = vadd.f32 %v299, %v303
    %s306 = sld [smem:[#allocation6 + $0x403]]
    %v307 = vstv %s306
    %v308 = vmul.f32 %v307, %v66
    %v309 = vmul.f32 %v307, %v67
    %v310 = vadd.f32 %v304, %v308
    %v311 = vadd.f32 %v305, %v309
    %s312 = sld [smem:[#allocation7 + $0x8]]
    %v313 = vstv %s312
    %v314 = vadd.f32 %v310, %v313
    %v315 = vadd.f32 %v311, %v313
    %v316 = vmax.f32 %v288, %v314
    %v317 = vmax.f32 %v289, %v315
    %s318 = sld [smem:[#allocation6 + $0x480]]
    %v319 = vstv %s318
    %v320 = vmul.f32 %v319, %v60
    %v321 = vmul.f32 %v319, %v61
    %s322 = sld [smem:[#allocation6 + $0x481]]
    %v323 = vstv %s322
    %v324 = vmul.f32 %v323, %v62
    %v325 = vmul.f32 %v323, %v63
    %v326 = vadd.f32 %v320, %v324
    %v327 = vadd.f32 %v321, %v325
    %s328 = sld [smem:[#allocation6 + $0x482]]
    %v329 = vstv %s328
    %v330 = vmul.f32 %v329, %v64
    %v331 = vmul.f32 %v329, %v65
    %v332 = vadd.f32 %v326, %v330
    %v333 = vadd.f32 %v327, %v331
    %s334 = sld [smem:[#allocation6 + $0x483]]
    %v335 = vstv %s334
    %v336 = vmul.f32 %v335, %v66
    %v337 = vmul.f32 %v335, %v67
    %v338 = vadd.f32 %v332, %v336
    %v339 = vadd.f32 %v333, %v337
    %s340 = sld [smem:[#allocation7 + $0x9]]
    %v341 = vstv %s340
    %v342 = vadd.f32 %v338, %v341
    %v343 = vadd.f32 %v339, %v341
    %v344 = vmax.f32 %v316, %v342
    %v345 = vmax.f32 %v317, %v343
    %s346 = sld [smem:[#allocation6 + $0x500]]
    %v347 = vstv %s346
    %v348 = vmul.f32 %v347, %v60
    %v349 = vmul.f32 %v347, %v61
    %s350 = sld [smem:[#allocation6 + $0x501]]
    %v351 = vstv %s350
    %v352 = vmul.f32 %v351, %v62
    %v353 = vmul.f32 %v351, %v63
    %v354 = vadd.f32 %v348, %v352
    %v355 = vadd.f32 %v349, %v353
    %s356 = sld [smem:[#allocation6 + $0x502]]
    %v357 = vstv %s356
    %v358 = vmul.f32 %v357, %v64
    %v359 = vmul.f32 %v357, %v65
    %v360 = vadd.f32 %v354, %v358
    %v361 = vadd.f32 %v355, %v359
    %s362 = sld [smem:[#allocation6 + $0x503]]
    %v363 = vstv %s362
    %v364 = vmul.f32 %v363, %v66
    %v365 = vmul.f32 %v363, %v67
    %v366 = vadd.f32 %v360, %v364
    %v367 = vadd.f32 %v361, %v365
    %s368 = sld [smem:[#allocation7 + $0xa]]
    %v369 = vstv %s368
    %v370 = vadd.f32 %v366, %v369
    %v371 = vadd.f32 %v367, %v369
    %v372 = vmax.f32 %v344, %v370
    %v373 = vmax.f32 %v345, %v371
    %s374 = sld [smem:[#allocation6 + $0x580]]
    %v375 = vstv %s374
    %v376 = vmul.f32 %v375, %v60
    %v377 = vmul.f32 %v375, %v61
    %s378 = sld [smem:[#allocation6 + $0x581]]
    %v379 = vstv %s378
    %v380 = vmul.f32 %v379, %v62
    %v381 = vmul.f32 %v379, %v63
    %v382 = vadd.f32 %v376, %v380
    %v383 = vadd.f32 %v377, %v381
    %s384 = sld [smem:[#allocation6 + $0x582]]
    %v385 = vstv %s384
    %v386 = vmul.f32 %v385, %v64
    %v387 = vmul.f32 %v385, %v65
    %v388 = vadd.f32 %v382, %v386
    %v389 = vadd.f32 %v383, %v387
    %s390 = sld [smem:[#allocation6 + $0x583]]
    %v391 = vstv %s390
    %v392 = vmul.f32 %v391, %v66
    %v393 = vmul.f32 %v391, %v67
    %v394 = vadd.f32 %v388, %v392
    %v395 = vadd.f32 %v389, %v393
    %s396 = sld [smem:[#allocation7 + $0xb]]
    %v397 = vstv %s396
    %v398 = vadd.f32 %v394, %v397
    %v399 = vadd.f32 %v395, %v397
    %v400 = vmax.f32 %v372, %v398
    %v401 = vmax.f32 %v373, %v399
    %s402 = sld [smem:[#allocation6 + $0x600]]
    %v403 = vstv %s402
    %v404 = vmul.f32 %v403, %v60
    %v405 = vmul.f32 %v403, %v61
    %s406 = sld [smem:[#allocation6 + $0x601]]
    %v407 = vstv %s406
    %v408 = vmul.f32 %v407, %v62
    %v409 = vmul.f32 %v407, %v63
    %v410 = vadd.f32 %v404, %v408
    %v411 = vadd.f32 %v405, %v409
    %s412 = sld [smem:[#allocation6 + $0x602]]
    %v413 = vstv %s412
    %v414 = vmul.f32 %v413, %v64
    %v415 = vmul.f32 %v413, %v65
    %v416 = vadd.f32 %v410, %v414
    %v417 = vadd.f32 %v411, %v415
    %s418 = sld [smem:[#allocation6 + $0x603]]
    %v419 = vstv %s418
    %v420 = vmul.f32 %v419, %v66
    %v421 = vmul.f32 %v419, %v67
    %v422 = vadd.f32 %v416, %v420
    %v423 = vadd.f32 %v417, %v421
    %s424 = sld [smem:[#allocation7 + $0xc]]
    %v425 = vstv %s424
    %v426 = vadd.f32 %v422, %v425
    %v427 = vadd.f32 %v423, %v425
    %v428 = vmax.f32 %v400, %v426
    %v429 = vmax.f32 %v401, %v427
    %s430 = sld [smem:[#allocation6 + $0x680]]
    %v431 = vstv %s430
    %v432 = vmul.f32 %v431, %v60
    %v433 = vmul.f32 %v431, %v61
    %s434 = sld [smem:[#allocation6 + $0x681]]
    %v435 = vstv %s434
    %v436 = vmul.f32 %v435, %v62
    %v437 = vmul.f32 %v435, %v63
    %v438 = vadd.f32 %v432, %v436
    %v439 = vadd.f32 %v433, %v437
    %s440 = sld [smem:[#allocation6 + $0x682]]
    %v441 = vstv %s440
    %v442 = vmul.f32 %v441, %v64
    %v443 = vmul.f32 %v441, %v65
    %v444 = vadd.f32 %v438, %v442
    %v445 = vadd.f32 %v439, %v443
    %s446 = sld [smem:[#allocation6 + $0x683]]
    %v447 = vstv %s446
    %v448 = vmul.f32 %v447, %v66
    %v449 = vmul.f32 %v447, %v67
    %v450 = vadd.f32 %v444, %v448
    %v451 = vadd.f32 %v445, %v449
    %s452 = sld [smem:[#allocation7 + $0xd]]
    %v453 = vstv %s452
    %v454 = vadd.f32 %v450, %v453
    %v455 = vadd.f32 %v451, %v453
    %v456 = vmax.f32 %v428, %v454
    %v457 = vmax.f32 %v429, %v455
    %s458 = sld [smem:[#allocation6 + $0x700]]
    %v459 = vstv %s458
    %v460 = vmul.f32 %v459, %v60
    %v461 = vmul.f32 %v459, %v61
    %s462 = sld [smem:[#allocation6 + $0x701]]
    %v463 = vstv %s462
    %v464 = vmul.f32 %v463, %v62
    %v465 = vmul.f32 %v463, %v63
    %v466 = vadd.f32 %v460, %v464
    %v467 = vadd.f32 %v461, %v465
    %s468 = sld [smem:[#allocation6 + $0x702]]
    %v469 = vstv %s468
    %v470 = vmul.f32 %v469, %v64
    %v471 = vmul.f32 %v469, %v65
    %v472 = vadd.f32 %v466, %v470
    %v473 = vadd.f32 %v467, %v471
    %s474 = sld [smem:[#allocation6 + $0x703]]
    %v475 = vstv %s474
    %v476 = vmul.f32 %v475, %v66
    %v477 = vmul.f32 %v475, %v67
    %v478 = vadd.f32 %v472, %v476
    %v479 = vadd.f32 %v473, %v477
    %s480 = sld [smem:[#allocation7 + $0xe]]
    %v481 = vstv %s480
    %v482 = vadd.f32 %v478, %v481
    %v483 = vadd.f32 %v479, %v481
    %v484 = vmax.f32 %v456, %v482
    %v485 = vmax.f32 %v457, %v483
    %s486 = sld [smem:[#allocation6 + $0x780]]
    %v487 = vstv %s486
    %v488 = vmul.f32 %v487, %v60
    %v489 = vmul.f32 %v487, %v61
    %s490 = sld [smem:[#allocation6 + $0x781]]
    %v491 = vstv %s490
    %v492 = vmul.f32 %v491, %v62
    %v493 = vmul.f32 %v491, %v63
    %v494 = vadd.f32 %v488, %v492
    %v495 = vadd.f32 %v489, %v493
    %s496 = sld [smem:[#allocation6 + $0x782]]
    %v497 = vstv %s496
    %v498 = vmul.f32 %v497, %v64
    %v499 = vmul.f32 %v497, %v65
    %v500 = vadd.f32 %v494, %v498
    %v501 = vadd.f32 %v495, %v499
    %s502 = sld [smem:[#allocation6 + $0x783]]
    %v503 = vstv %s502
    %v504 = vmul.f32 %v503, %v66
    %v505 = vmul.f32 %v503, %v67
    %v506 = vadd.f32 %v500, %v504
    %v507 = vadd.f32 %v501, %v505
    %s508 = sld [smem:[#allocation7 + $0xf]]
    %v509 = vstv %s508
    %v510 = vadd.f32 %v506, %v509
    %v511 = vadd.f32 %v507, %v509
    %v512 = vmax.f32 %v484, %v510
    %v513 = vmax.f32 %v485, %v511
    %514 = vst [vmem:[#allocation9] sm:$0xff] %v512
    %515 = vst [vmem:[#allocation9 + $0x8] sm:$0xff] %v513
    %v516 = vld [vmem:[#allocation2] sm:$0xff]
    %v517 = vld [vmem:[#allocation2 + $0x8] sm:$0xff]
    %v518 = vld [vmem:[#allocation2 + $0x10] sm:$0xff]
    %v519 = vld [vmem:[#allocation2 + $0x18] sm:$0xff]
    %v520 = vld [vmem:[#allocation2 + $0x20] sm:$0xff]
    %v521 = vld [vmem:[#allocation2 + $0x28] sm:$0xff]
    %v522 = vld [vmem:[#allocation2 + $0x30] sm:$0xff]
    %v523 = vld [vmem:[#allocation2 + $0x38] sm:$0xff]
    %v524 = vmul.f32 %v516, %v520
    %v525 = vmul.f32 %v517, %v521
    %v526 = vadd.f32 %v524, %v525
    %527 = vadd.xlane.f32.xlu0 %v526
    %v528 = vpop.xlane.xlu0 %527
    %v529 = vmul.f32 %v516, %v522
    %v530 = vmul.f32 %v517, %v523
    %v531 = vadd.f32 %v529, %v530
    %532 = vadd.xlane.f32.xlu0 %v531
    %v533 = vpop.xlane.xlu0 %532
    %v534 = vmul.f32 %v518, %v520
    %v535 = vmul.f32 %v519, %v521
    %v536 = vadd.f32 %v534, %v535
    %537 = vadd.xlane.f32.xlu0 %v536
    %v538 = vpop.xlane.xlu0 %537
    %v539 = vmul.f32 %v518, %v522
    %v540 = vmul.f32 %v519, %v523
    %v541 = vadd.f32 %v539, %v540
    %542 = vadd.xlane.f32.xlu0 %v541
    %v543 = vpop.xlane.xlu0 %542
    %v544 = vmul.f32 %v516, %v516
    %v545 = vmul.f32 %v517, %v517
    %v546 = vadd.f32 %v544, %v545
    %547 = vadd.xlane.f32.xlu0 %v546
    %v548 = vpop.xlane.xlu0 %547
    %v549 = vmul.f32 %v516, %v518
    %v550 = vmul.f32 %v517, %v519
    %v551 = vadd.f32 %v549, %v550
    %552 = vadd.xlane.f32.xlu0 %v551
    %v553 = vpop.xlane.xlu0 %552
    %v554 = vmul.f32 %v518, %v518
    %v555 = vmul.f32 %v519, %v519
    %v556 = vadd.f32 %v554, %v555
    %557 = vadd.xlane.f32.xlu0 %v556
    %v558 = vpop.xlane.xlu0 %557
    %v559 = vmul.f32 %v520, %v520
    %v560 = vmul.f32 %v521, %v521
    %v561 = vadd.f32 %v559, %v560
    %562 = vadd.xlane.f32.xlu0 %v561
    %v563 = vpop.xlane.xlu0 %562
    %v564 = vmul.f32 %v520, %v522
    %v565 = vmul.f32 %v521, %v523
    %v566 = vadd.f32 %v564, %v565
    %567 = vadd.xlane.f32.xlu0 %v566
    %v568 = vpop.xlane.xlu0 %567
    %v569 = vmul.f32 %v522, %v522
    %v570 = vmul.f32 %v523, %v523
    %v571 = vadd.f32 %v569, %v570
    %572 = vadd.xlane.f32.xlu0 %v571
    %v573 = vpop.xlane.xlu0 %572
    %v574 = vadd.f32 %v516, %v517
    %575 = vadd.xlane.f32.xlu0 %v574
    %v576 = vpop.xlane.xlu0 %575
    %v577 = vadd.f32 %v518, %v519
    %578 = vadd.xlane.f32.xlu0 %v577
    %v579 = vpop.xlane.xlu0 %578
    %v580 = vadd.f32 %v520, %v521
    %581 = vadd.xlane.f32.xlu0 %v580
    %v582 = vpop.xlane.xlu0 %581
    %v583 = vadd.f32 %v522, %v523
    %584 = vadd.xlane.f32.xlu0 %v583
    %v585 = vpop.xlane.xlu0 %584
    %v586 = vld [vmem:[%s3] sm:$0x3]
    %v587 = vld [vmem:[%s4] sm:$0x1]
    %v588 = vmul.f32 %v586, %v586
    %v589 = vlaneseq
    %v590 = vshrl.u32 %v589, 7
    %v591 = vsub.s32 0, %v590
    %v592 = vrot.slane %v588, %v591
    %v593 = vmul.f32 %v592, %v528
    %v595 = vrot.slane %v586, 1
    %v597 = vmul.f32 %v586, %v595
    %v598 = vlaneseq
    %v599 = vshrl.u32 %v598, 7
    %v600 = vsub.s32 0, %v599
    %v601 = vrot.slane %v597, %v600
    %v602 = vmul.f32 %v601, %v533
    %v603 = vadd.f32 %v593, %v602
    %v604 = vmul.f32 %v592, %v548
    %v605 = vmul.f32 %v592, %v563
    %v606 = vmul.f32 %v597, 2.0
    %v607 = vlaneseq
    %v608 = vshrl.u32 %v607, 7
    %v609 = vsub.s32 0, %v608
    %v610 = vrot.slane %v606, %v609
    %v611 = vmul.f32 %v610, %v553
    %v612 = vadd.f32 %v604, %v611
    %v613 = vmul.f32 %v610, %v568
    %v614 = vadd.f32 %v605, %v613
    %v615 = vmul.f32 %v587, %v586
    %v616 = vadd.f32 %v576, %v582
    %v618 = vlaneseq
    %v619 = vshrl.u32 %v618, 7
    %v620 = vsub.s32 0, %v619
    %v621 = vrot.slane %v615, %v620
    %v623 = vmul.f32 %v621, %v616
    %v624 = vadd.f32 %v603, %v623
    %v625 = vmul.f32 %v615, 2.0
    %v627 = vlaneseq
    %v628 = vshrl.u32 %v627, 7
    %v629 = vsub.s32 0, %v628
    %v630 = vrot.slane %v625, %v629
    %v632 = vmul.f32 %v630, %v576
    %v633 = vadd.f32 %v612, %v632
    %v634 = vmul.f32 %v630, %v582
    %v635 = vadd.f32 %v614, %v634
    %v636 = vmul.f32 %v601, %v538
    %v637 = vadd.f32 %v624, %v636
    %v638 = vlaneseq
    %v639 = vshrl.u32 %v638, 7
    %v640 = vsub.s32 1, %v639
    %v641 = vrot.slane %v588, %v640
    %v642 = vmul.f32 %v641, %v543
    %v643 = vadd.f32 %v637, %v642
    %v644 = vmul.f32 %v641, %v558
    %v645 = vadd.f32 %v633, %v644
    %v646 = vmul.f32 %v641, %v573
    %v647 = vadd.f32 %v635, %v646
    %v649 = vunpack.c.l.s4 1966171168
    %v650 = vunpack.c.0.s8 %v649
    %v651 = vlaneseq
    %v652 = vshrl.u32 %v651, 7
    %v653 = vsub.s32 %v650, %v652
    %v654 = vrot.slane %v586, %v653
    %v655 = vcombine.high %v654, %v654
    %v657 = vunpack.c.l.s4 1966171168
    %v658 = vunpack.c.0.s8 %v657
    %v659 = vlaneseq
    %v660 = vshrl.u32 %v659, 7
    %v661 = vsub.s32 %v658, %v660
    %v662 = vrot.slane %v655, %v661
    %v664 = vmul.f32 %v587, %v662
    %v665 = vadd.f32 %v579, %v585
    %v667 = vlaneseq
    %v668 = vshrl.u32 %v667, 7
    %v669 = vsub.s32 0, %v668
    %v670 = vrot.slane %v664, %v669
    %v672 = vmul.f32 %v670, %v665
    %v673 = vadd.f32 %v643, %v672
    %v674 = vmul.f32 %v664, 2.0
    %v676 = vlaneseq
    %v677 = vshrl.u32 %v676, 7
    %v678 = vsub.s32 0, %v677
    %v679 = vrot.slane %v674, %v678
    %v681 = vmul.f32 %v679, %v579
    %v682 = vadd.f32 %v645, %v681
    %v683 = vmul.f32 %v679, %v585
    %v684 = vadd.f32 %v647, %v683
    %v685 = vmul.f32 %v587, %v587
    %v686 = vmul.f32 %v685, 256.0
    %v688 = vlaneseq
    %v689 = vshrl.u32 %v688, 7
    %v690 = vsub.s32 0, %v689
    %v691 = vrot.slane %v686, %v690
    %v693 = vadd.f32 %v673, %v691
    %v694 = vadd.f32 %v682, %v691
    %v695 = vadd.f32 %v684, %v691
    %v696 = vmul.f32 %v694, %v695
    %v697 = vmax.f32 %v696, 1e-16
    %v698 = vrsqrt.pop %v697
    %v699 = vmul.f32 %v693, %v698
    %vm700 = vcmask 130048
    %701 = vst.msk [vmem:[#allocation9 + $0x10] sm:$0xff] %vm700, %v699
    // Predicated region
    $region34: #{tpu_custom_call.1} parent=1 // pred_check
      _
    $region35: #{tpu_custom_call.1} parent=1 // pred_check_branch
      %703 = sbr.rel (0) target = $region37
    $region36: #{tpu_custom_call.1} parent=1 // pred_region
      %s705 = ssub.s32 384, 384
      %706 = vsyncadd [#allocation4], %s705
      %s708 = sshll.u32 [#allocation9], 4
      %s709 = int_to_ptr.vmem [resolvable:$true] %s708
      %711 = dma.vmem_to_hbm [thread:$0]  %s709, 384, %s5, [#allocation4]
    $region37: #{tpu_custom_call.1} parent=1 // pred_fallthru
      _
    // Predicated region
    $region38: #{tpu_custom_call.1} parent=1 // pred_check
      _
    $region39: #{tpu_custom_call.1} parent=1 // pred_check_branch
      %713 = sbr.rel (0) target = $region41
    $region40: #{tpu_custom_call.1} parent=1 // pred_region
      %714 = dma.done [#allocation4], 384
    $region41: #{tpu_custom_call.1} parent=1 // pred_fallthru
      _
    %715 = vsyncpa [#allocation3], 1
    %716 = vsyncpa [#allocation4], 1
    %717 = vsyncpa [#allocation5], 1
    %718 = vsyncpa [#allocation8], 1

</llo_original>
